<compile_context>
chip_gen: v5e
topology: v5e:2x2
jax: 0.10.0
libtpu: 0.0.40
codegen_flags: <defaults>
</compile_context>

<pallas_src>
import functools

import jax
import jax.numpy as jnp
from jax.experimental import pallas as pl
from jax.experimental.pallas import tpu as pltpu


def _round_up(x, m):
    return (x + m - 1) // m * m


def _default_compute_dtype():
    """bf16 matmul operands on v6e/v7x, f32 elsewhere (v5e has no bf16 VPU/EUP)."""
    try:
        kind = jax.devices()[0].device_kind.lower()
    except Exception:
        return jnp.float32
    if any(tag in kind for tag in ("v6", "v7", "6e", "7x")):
        return jnp.bfloat16
    return jnp.float32


# ---------------------------------------------------------------------------
# Kernel: one MXU matmul per (batch, row-tile) grid step + fused epilogue.
# ---------------------------------------------------------------------------
def _matmul_bn_relu_kernel(p_ref, w_ref, aff_ref, o_ref):
    # p_ref:   (1, TILE_M, K_pad)   compute dtype   im2col patch rows
    # w_ref:   (K_pad, Cout_p)      compute dtype   rows ordered (kh, kw, ci)
    # aff_ref: (2, Cout_p) f32      row0 = BN scale, row1 = BN shift + bias*scale
    # o_ref:   (1, TILE_M, Cout_p)  output dtype
    acc = jnp.dot(p_ref[0], w_ref[...], preferred_element_type=jnp.float32)
    scale = aff_ref[0]
    shift = aff_ref[1]                        # conv bias already folded in
    o_ref[0] = jnp.maximum(acc * scale + shift, 0.0).astype(o_ref.dtype)


# ---------------------------------------------------------------------------
# Wrapper-side preparation.
# ---------------------------------------------------------------------------
def _im2col(x_nhwc, kh, kw):
    """(N,H,W,Cin) -> (N, Ho*Wo, KH*KW*Cin), columns ordered (kh, kw, ci)."""
    N, H, W, Cin = x_nhwc.shape
    Ho, Wo = H - kh + 1, W - kw + 1
    cols = [
        x_nhwc[:, i:i + Ho, j:j + Wo, :].reshape(N, Ho * Wo, Cin)
        for i in range(kh) for j in range(kw)
    ]
    return jnp.concatenate(cols, axis=-1)


def _fold_and_pad_params(weight_hwio, bias, bn_scale, bn_shift, k_pad, cout_p,
                         compute_dtype):
    KH, KW, Cin, Cout = weight_hwio.shape
    k_exact = KH * KW * Cin
    w_mat = weight_hwio.reshape(k_exact, Cout)
    w_mat = jnp.pad(w_mat, ((0, k_pad - k_exact), (0, cout_p - Cout)))
    w_mat = w_mat.astype(compute_dtype)
    # Fold conv bias into BN shift: (conv + b)*s + t == conv*s + (t + b*s)
    scale = jnp.pad(bn_scale, (0, cout_p - Cout))
    shift = jnp.pad(bn_shift + bias * bn_scale, (0, cout_p - Cout))
    affine = jnp.stack([scale, shift], axis=0).astype(jnp.float32)   # (2, Cout_p)
    return w_mat, affine


_VMEM_TILE_BUDGET = 40 * 1024 * 1024   # v7x-safe (64 MiB/TC); conservative on v5e/v6e


def _pick_tile_m(m, k_pad, cout_p, compute_bytes, out_bytes):
    sub = 16                            # sublane multiple valid for f32 and bf16
    m_min = _round_up(m, sub)
    # 2x double-buffered input tile + 2x output tile + weight + affine under budget.
    fixed = k_pad * cout_p * compute_bytes + 2 * cout_p * 4
    per_row = 2 * (k_pad * compute_bytes + cout_p * out_bytes)
    max_rows = max((_VMEM_TILE_BUDGET - fixed) // per_row, sub)
    tile = min(m_min, 512, (int(max_rows) // sub) * sub)
    return max(tile, sub)


def _conv_call(patches_p, w_mat, affine, tile_m, out_dtype, single_buffer_consts):
    N, m_pad, k_pad = patches_p.shape
    _, cout_p = w_mat.shape
    grid = (N, m_pad // tile_m)

    # Grid-invariant operands -> single buffer (review item); fallback handled above.
    const_kwargs = dict(pipeline_mode=pl.Buffered(1)) if single_buffer_consts else {}

    out_bytes = jnp.dtype(out_dtype).itemsize
    vmem_needed = (
        2 * tile_m * (k_pad * patches_p.dtype.itemsize + cout_p * out_bytes)
        + k_pad * cout_p * w_mat.dtype.itemsize
        + 2 * cout_p * 4
        + (2 << 20))                                  # slack for compiler scratch

    return pl.pallas_call(
        _matmul_bn_relu_kernel,
        out_shape=jax.ShapeDtypeStruct((N, m_pad, cout_p), out_dtype),
        grid_spec=pltpu.PrefetchScalarGridSpec(
            num_scalar_prefetch=0,
            grid=grid,
            in_specs=[
                pl.BlockSpec((1, tile_m, k_pad), lambda n, r: (n, r, 0)),
                pl.BlockSpec((k_pad, cout_p), lambda n, r: (0, 0), **const_kwargs),
                pl.BlockSpec((2, cout_p), lambda n, r: (0, 0), **const_kwargs),
            ],
            out_specs=pl.BlockSpec((1, tile_m, cout_p), lambda n, r: (n, r, 0)),
        ),
        compiler_params=pltpu.CompilerParams(
            dimension_semantics=("parallel", "parallel"),   # batch x row-tiles
            vmem_limit_bytes=int(min(96 << 20, max(32 << 20, vmem_needed))),
        ),
    )(patches_p, w_mat, affine)


@functools.partial(
    jax.jit,
    static_argnames=("kernel_size", "padding", "stride", "compute_dtype",
                     "single_buffer_consts"))
def _conv_layer_forward_nhwc_impl(x_nhwc, weight_hwio, bias, bn_scale, bn_shift,
                                  *, kernel_size, padding, stride, compute_dtype,
                                  single_buffer_consts):
    assert stride == 1 and padding == 0, "module defaults: stride=1, padding=0"
    N, H, W, Cin = x_nhwc.shape
    KH, KW, _, Cout = weight_hwio.shape
    assert KH == kernel_size and KW == kernel_size
    Ho, Wo = H - KH + 1, W - KW + 1
    m = Ho * Wo
    k_exact = KH * KW * Cin
    k_pad = _round_up(k_exact, 128)     # MXU-aligned contraction dim

    # Lane-dense 128-wide output only when Cout is big enough to be worth the HBM
    # write bytes; tiny Cout (e.g. 8) keeps narrow masked stores instead of 16x pad.
    cout_p = _round_up(Cout, 128) if Cout >= 64 else _round_up(Cout, 8)

    compute_bytes = jnp.dtype(compute_dtype).itemsize
    out_bytes = jnp.dtype(x_nhwc.dtype).itemsize
    tile_m = _pick_tile_m(m, k_pad, cout_p, compute_bytes, out_bytes)
    m_pad = _round_up(m, tile_m)

    patches = _im2col(x_nhwc, KH, KW)                               # (N, m, k_exact)
    patches = jnp.pad(patches, ((0, 0), (0, m_pad - m), (0, k_pad - k_exact)))
    patches = patches.astype(compute_dtype)

    w_mat, affine = _fold_and_pad_params(weight_hwio, bias, bn_scale, bn_shift,
                                         k_pad, cout_p, compute_dtype)

    out_flat = _conv_call(patches, w_mat, affine, tile_m, x_nhwc.dtype,
                          single_buffer_consts)
    return out_flat[:, :m, :Cout].reshape(N, Ho, Wo, Cout)


def conv_layer_forward_nhwc(x_nhwc, weight_hwio, bias, bn_scale, bn_shift,
                            *, kernel_size=3, padding=0, stride=1,
                            compute_dtype=None):
    """Transpose-free fast path: NHWC in -> NHWC out."""
    if compute_dtype is None:
        compute_dtype = _default_compute_dtype()
    kwargs = dict(kernel_size=kernel_size, padding=padding, stride=stride,
                  compute_dtype=compute_dtype)
    try:
        return _conv_layer_forward_nhwc_impl(
            x_nhwc, weight_hwio, bias, bn_scale, bn_shift,
            single_buffer_consts=True, **kwargs)
    except Exception:
        # Fallback if this Pallas build rejects pipeline_mode=pl.Buffered(1) on the
        # grid-invariant operands; only costs one extra (small) constant buffer.
        return _conv_layer_forward_nhwc_impl(
            x_nhwc, weight_hwio, bias, bn_scale, bn_shift,
            single_buffer_consts=False, **kwargs)


def conv_layer_forward(x_nchw, weight_hwio, bias, bn_scale, bn_shift,
                       *, kernel_size=3, padding=0, stride=1, compute_dtype=None):
    """PyTorch-layout wrapper: NCHW in -> NCHW out.

    The NCHW<->NHWC converts each cost an HBM round trip; models keeping
    activations NHWC end-to-end should call conv_layer_forward_nhwc directly.
    """
    x_nhwc = jnp.transpose(x_nchw, (0, 2, 3, 1))
    out_nhwc = conv_layer_forward_nhwc(
        x_nhwc, weight_hwio, bias, bn_scale, bn_shift,
        kernel_size=kernel_size, padding=padding, stride=stride,
        compute_dtype=compute_dtype)
    return jnp.transpose(out_nhwc, (0, 3, 1, 2))


def _reference(x_nchw, weight_hwio, bias, bn_scale, bn_shift):
    # Pure-JAX reference (lax conv) for sanity checking the kernel.
    w_oihw = jnp.transpose(weight_hwio, (3, 2, 0, 1))
    y = jax.lax.conv_general_dilated(
        x_nchw, w_oihw, window_strides=(1, 1), padding="VALID",
        dimension_numbers=("NCHW", "OIHW", "NCHW"))
    y = y + bias[None, :, None, None]
    y = y * bn_scale[None, :, None, None] + bn_shift[None, :, None, None]
    return jnp.maximum(y, 0.0)


if __name__ == "__main__":
    # Small shapes consistent with the module: batch=2, in=4, out=8, spatial=16, k=3.
    N, Cin, Cout, H, W, K = 2, 4, 8, 16, 16, 3

    key = jax.random.PRNGKey(0)
    kx, kw_, kb = jax.random.split(key, 3)

    x = jax.random.normal(kx, (N, Cin, H, W), dtype=jnp.float32)

    # Deterministic Conv2d params (HWIO layout for the kernel).
    weight = jax.random.normal(kw_, (K, K, Cin, Cout), dtype=jnp.float32) * 0.1
    bias = jax.random.normal(kb, (Cout,), dtype=jnp.float32) * 0.1

    # BatchNorm2d default init, eval-mode statistics folded to scale/shift.
    eps = 1e-5
    gamma = jnp.ones((Cout,), jnp.float32)
    beta = jnp.zeros((Cout,), jnp.float32)
    running_mean = jnp.zeros((Cout,), jnp.float32)
    running_var = jnp.ones((Cout,), jnp.float32)
    bn_scale = gamma / jnp.sqrt(running_var + eps)
    bn_shift = beta - running_mean * bn_scale

    ref = _reference(x, weight, bias, bn_scale, bn_shift)

    # f32 operand path (exact within f32 rounding, matches PyTorch semantics).
    out = conv_layer_forward(x, weight, bias, bn_scale, bn_shift,
                             compute_dtype=jnp.float32)
    out = jax.block_until_ready(out)
    assert out.shape == (N, Cout, H - K + 1, W - K + 1), out.shape
    assert jnp.allclose(out, ref, atol=1e-4, rtol=1e-4), \
        float(jnp.max(jnp.abs(out - ref)))

    # Generation-default path (bf16 operands on v6e/v7x, f32 elsewhere);
    # MXU accumulation and epilogue stay f32.
    out_d = conv_layer_forward(x, weight, bias, bn_scale, bn_shift)
    out_d = jax.block_until_ready(out_d)
    assert out_d.shape == out.shape
    assert jnp.allclose(out_d, ref, atol=1e-1, rtol=1e-1), \
        float(jnp.max(jnp.abs(out_d - ref)))

    print("KERNEL_OK")
</pallas_src>

<mosaic_0001>
module attributes {stable_mosaic.version = 11 : i64} {
  func.func @_matmul_bn_relu_kernel(%arg0: i32, %arg1: i32, %arg2: memref<1x208x128xf32, #tpu.memory_space<vmem>>, %arg3: memref<128x8xf32, #tpu.memory_space<vmem>>, %arg4: memref<2x8xf32, #tpu.memory_space<vmem>>, %arg5: memref<1x208x8xf32, #tpu.memory_space<vmem>>) attributes {dimension_semantics = [#tpu.dimension_semantics<parallel>, #tpu.dimension_semantics<parallel>], iteration_bounds = array<i64: 2, 1>, scalar_prefetch = 0 : i64, scratch_operands = 0 : i64, tpu.core_type = #tpu.core_type<tc>, window_params = [{transform_indices = @transform_0, window_bounds = array<i64: 1, 208, 128>}, {pipeline_mode = #tpu.pipeline_mode<synchronous>, transform_indices = @transform_1, window_bounds = array<i64: 128, 8>}, {pipeline_mode = #tpu.pipeline_mode<synchronous>, transform_indices = @transform_2, window_bounds = array<i64: 2, 8>}, {transform_indices = @transform_3, window_bounds = array<i64: 1, 208, 8>}]} {
    %c0 = arith.constant 0 : index
    %c0_0 = arith.constant 0 : index
    %c0_1 = arith.constant 0 : index
    %0 = vector.load %arg2[%c0, %c0_0, %c0_1] : memref<1x208x128xf32, #tpu.memory_space<vmem>>, vector<1x208x128xf32>
    %1 = vector.shape_cast %0 : vector<1x208x128xf32> to vector<208x128xf32>
    %c0_2 = arith.constant 0 : index
    %c0_3 = arith.constant 0 : index
    %2 = vector.load %arg3[%c0_2, %c0_3] : memref<128x8xf32, #tpu.memory_space<vmem>>, vector<128x8xf32>
    %cst = arith.constant dense<0.000000e+00> : vector<208x8xf32>
    %3 = tpu.matmul %1, %2, %cst {dimension_numbers = #tpu.dot_dimension_numbers<[1], [0], [0], [1], [0, 0, 1, 1], [], []>} : vector<208x128xf32>, vector<128x8xf32>, vector<208x8xf32> -> vector<208x8xf32>
    %c0_4 = arith.constant 0 : index
    %c0_5 = arith.constant 0 : index
    %4 = vector.load %arg4[%c0_4, %c0_5] : memref<2x8xf32, #tpu.memory_space<vmem>>, vector<1x8xf32>
    %5 = vector.shape_cast %4 : vector<1x8xf32> to vector<8xf32>
    %c1 = arith.constant 1 : index
    %c0_6 = arith.constant 0 : index
    %6 = vector.load %arg4[%c1, %c0_6] : memref<2x8xf32, #tpu.memory_space<vmem>>, vector<1x8xf32>
    %7 = vector.shape_cast %6 : vector<1x8xf32> to vector<8xf32>
    %8 = vector.shape_cast %5 : vector<8xf32> to vector<1x8xf32>
    %9 = vector.broadcast %8 : vector<1x8xf32> to vector<208x8xf32>
    %10 = arith.mulf %3, %9 : vector<208x8xf32>
    %11 = vector.shape_cast %7 : vector<8xf32> to vector<1x8xf32>
    %12 = vector.broadcast %11 : vector<1x8xf32> to vector<208x8xf32>
    %13 = arith.addf %10, %12 : vector<208x8xf32>
    %cst_7 = arith.constant 0.000000e+00 : f32
    %14 = vector.broadcast %cst_7 : f32 to vector<208x8xf32>
    %15 = arith.maximumf %13, %14 : vector<208x8xf32>
    %c0_8 = arith.constant 0 : index
    %c0_9 = arith.constant 0 : index
    %c0_10 = arith.constant 0 : index
    %16 = vector.load %arg5[%c0_8, %c0_9, %c0_10] : memref<1x208x8xf32, #tpu.memory_space<vmem>>, vector<1x208x8xf32>
    %17 = vector.shape_cast %16 : vector<1x208x8xf32> to vector<208x8xf32>
    %18 = vector.shape_cast %15 : vector<208x8xf32> to vector<1x208x8xf32>
    tpu.vector_store %arg5[%c0_8, %c0_9, %c0_10], %18 {strides = array<i32>} : memref<1x208x8xf32, #tpu.memory_space<vmem>>, vector<1x208x8xf32>,
    return
  }
  func.func @transform_0(%arg0: i32, %arg1: i32) -> (i32, i32, i32) {
    %c0_i32 = arith.constant 0 : i32
    %c0_i32_0 = arith.constant 0 : i32
    return %arg0, %arg1, %c0_i32 : i32, i32, i32
  }
  func.func @transform_1(%arg0: i32, %arg1: i32) -> (i32, i32) {
    %c0_i32 = arith.constant 0 : i32
    %c0_i32_0 = arith.constant 0 : i32
    %c0_i32_1 = arith.constant 0 : i32
    return %c0_i32, %c0_i32_0 : i32, i32
  }
  func.func @transform_2(%arg0: i32, %arg1: i32) -> (i32, i32) {
    %c0_i32 = arith.constant 0 : i32
    %c0_i32_0 = arith.constant 0 : i32
    %c0_i32_1 = arith.constant 0 : i32
    return %c0_i32, %c0_i32_0 : i32, i32
  }
  func.func @transform_3(%arg0: i32, %arg1: i32) -> (i32, i32, i32) {
    %c0_i32 = arith.constant 0 : i32
    %c0_i32_0 = arith.constant 0 : i32
    return %arg0, %arg1, %c0_i32 : i32, i32, i32
  }
}

module attributes {stable_mosaic.version = 11 : i64} {
  func.func @_matmul_bn_relu_kernel(%arg0: i32, %arg1: i32, %arg2: memref<1x208x128xf32, #tpu.memory_space<vmem>>, %arg3: memref<128x8xf32, #tpu.memory_space<vmem>>, %arg4: memref<2x8xf32, #tpu.memory_space<vmem>>, %arg5: memref<1x208x8xf32, #tpu.memory_space<vmem>>) attributes {dimension_semantics = [#tpu.dimension_semantics<parallel>, #tpu.dimension_semantics<parallel>], iteration_bounds = array<i64: 2, 1>, scalar_prefetch = 0 : i64, scratch_operands = 0 : i64, tpu.core_type = #tpu.core_type<tc>, window_params = [{transform_indices = @transform_0, window_bounds = array<i64: 1, 208, 128>}, {pipeline_mode = #tpu.pipeline_mode<synchronous>, transform_indices = @transform_1, window_bounds = array<i64: 128, 8>}, {pipeline_mode = #tpu.pipeline_mode<synchronous>, transform_indices = @transform_2, window_bounds = array<i64: 2, 8>}, {transform_indices = @transform_3, window_bounds = array<i64: 1, 208, 8>}]} {
    %c0 = arith.constant 0 : index
    %c0_0 = arith.constant 0 : index
    %c0_1 = arith.constant 0 : index
    %0 = vector.load %arg2[%c0, %c0_0, %c0_1] : memref<1x208x128xf32, #tpu.memory_space<vmem>>, vector<1x208x128xf32>
    %1 = vector.shape_cast %0 : vector<1x208x128xf32> to vector<208x128xf32>
    %c0_2 = arith.constant 0 : index
    %c0_3 = arith.constant 0 : index
    %2 = vector.load %arg3[%c0_2, %c0_3] : memref<128x8xf32, #tpu.memory_space<vmem>>, vector<128x8xf32>
    %cst = arith.constant dense<0.000000e+00> : vector<208x8xf32>
    %3 = tpu.matmul %1, %2, %cst {dimension_numbers = #tpu.dot_dimension_numbers<[1], [0], [0], [1], [0, 0, 1, 1], [], []>} : vector<208x128xf32>, vector<128x8xf32>, vector<208x8xf32> -> vector<208x8xf32>
    %c0_4 = arith.constant 0 : index
    %c0_5 = arith.constant 0 : index
    %4 = vector.load %arg4[%c0_4, %c0_5] : memref<2x8xf32, #tpu.memory_space<vmem>>, vector<1x8xf32>
    %5 = vector.shape_cast %4 : vector<1x8xf32> to vector<8xf32>
    %c1 = arith.constant 1 : index
    %c0_6 = arith.constant 0 : index
    %6 = vector.load %arg4[%c1, %c0_6] : memref<2x8xf32, #tpu.memory_space<vmem>>, vector<1x8xf32>
    %7 = vector.shape_cast %6 : vector<1x8xf32> to vector<8xf32>
    %8 = vector.shape_cast %5 : vector<8xf32> to vector<1x8xf32>
    %9 = vector.broadcast %8 : vector<1x8xf32> to vector<208x8xf32>
    %10 = arith.mulf %3, %9 : vector<208x8xf32>
    %11 = vector.shape_cast %7 : vector<8xf32> to vector<1x8xf32>
    %12 = vector.broadcast %11 : vector<1x8xf32> to vector<208x8xf32>
    %13 = arith.addf %10, %12 : vector<208x8xf32>
    %cst_7 = arith.constant 0.000000e+00 : f32
    %14 = vector.broadcast %cst_7 : f32 to vector<208x8xf32>
    %15 = arith.maximumf %13, %14 : vector<208x8xf32>
    %c0_8 = arith.constant 0 : index
    %c0_9 = arith.constant 0 : index
    %c0_10 = arith.constant 0 : index
    %16 = vector.load %arg5[%c0_8, %c0_9, %c0_10] : memref<1x208x8xf32, #tpu.memory_space<vmem>>, vector<1x208x8xf32>
    %17 = vector.shape_cast %16 : vector<1x208x8xf32> to vector<208x8xf32>
    %18 = vector.shape_cast %15 : vector<208x8xf32> to vector<1x208x8xf32>
    tpu.vector_store %arg5[%c0_8, %c0_9, %c0_10], %18 {strides = array<i32>} : memref<1x208x8xf32, #tpu.memory_space<vmem>>, vector<1x208x8xf32>,
    return
  }
  func.func @transform_0(%arg0: i32, %arg1: i32) -> (i32, i32, i32) {
    %c0_i32 = arith.constant 0 : i32
    %c0_i32_0 = arith.constant 0 : i32
    return %arg0, %arg1, %c0_i32 : i32, i32, i32
  }
  func.func @transform_1(%arg0: i32, %arg1: i32) -> (i32, i32) {
    %c0_i32 = arith.constant 0 : i32
    %c0_i32_0 = arith.constant 0 : i32
    %c0_i32_1 = arith.constant 0 : i32
    return %c0_i32, %c0_i32_0 : i32, i32
  }
  func.func @transform_2(%arg0: i32, %arg1: i32) -> (i32, i32) {
    %c0_i32 = arith.constant 0 : i32
    %c0_i32_0 = arith.constant 0 : i32
    %c0_i32_1 = arith.constant 0 : i32
    return %c0_i32, %c0_i32_0 : i32, i32
  }
  func.func @transform_3(%arg0: i32, %arg1: i32) -> (i32, i32, i32) {
    %c0_i32 = arith.constant 0 : i32
    %c0_i32_0 = arith.constant 0 : i32
    return %arg0, %arg1, %c0_i32 : i32, i32, i32
  }
}

</mosaic_0001>

<llo_original>
// kernel: _conv_layer_forward_nhwc_impl.1
$region0: #{_conv_layer_forward_nhwc_impl.1}
  #allocation0 [shape = 'u32[]', space=smem, size = 0x4, offset = 0x4, fixed_abs, tag = 'smem constant byte address 0x4 - core index']
  #allocation1 [shape = 'u32[72,128]{1,0:T(1,128)}', space=vmem, size = 0x9000, scoped, tag = 'internal scratch']
  %s0 = inlined_call_operand.vmem [shape: f32[2,208,128], index: 0, kind: input, shape index: {}]
  %s1 = inlined_call_operand.vmem [shape: f32[128,8], index: 1, kind: input, shape index: {}]
  %s2 = inlined_call_operand.vmem [shape: f32[2,8], index: 2, kind: input, shape index: {}]
  %s3 = inlined_call_operand.vmem [shape: f32[2,208,8], index: 3, kind: output, shape index: {}]
  %s4 = sld [smem:[#allocation0]]
  $region45: #{_conv_layer_forward_nhwc_impl.1} parent=0
    _
  %s6 = ssub.s32 1, %s4
  %s7 = scalar_select 0, %s6, %s4
  loop: start=0, step=1, limit=4
  $region2: #{_conv_layer_forward_nhwc_impl.1} parent=0 // loop_pre_header
    _
  $region3: #{_conv_layer_forward_nhwc_impl.1} parent=0 // loop_header
    %s9 = sphi 0, %s13
    %p10 = scmp.ge.s32.totalorder %s9, 4
    %s16 = sphi 0, %s28
    %s17 = sphi 0, %s24
    %s18 = sphi 0, %s16
    %s19 = sphi 0, %s17
    %s20 = sphi 0, %s18
    %s21 = sphi 0, %s19
    %s33 = sphi 0, %s35
    %s36 = sphi 0, %s33
    %s37 = sphi 0, %s36
    %s53 = sphi 0, %s37
    %s57 = sphi 0, %s57
    %s59 = sphi 0, %s57
    %s60 = sphi 0, %s59
    %s74 = sphi 0, %s60
    %s78 = sphi 0, %s78
    %s80 = sphi 0, %s78
    %s81 = sphi 0, %s80
    %s95 = sphi 0, %s81
    %s103 = sphi 0, %s105
    %s106 = sphi 0, %s103
    %s107 = sphi 0, %s106
    %s123 = sphi 0, %s107
  $region4: #{_conv_layer_forward_nhwc_impl.1} parent=0 // loop_header_branch
    %12 = sbr.rel (%p10) target = $region8
  $region5: #{_conv_layer_forward_nhwc_impl.1} parent=0 // loop_body
    %s14 = ssub.s32 %s9, 1
    %s15 = ssub.s32 %s9, 2
    %s22 = sadd.s32 1, %s17
    %p23 = scmp.ge.s32.totalorder %s22, 1
    %s24 = scalar_select %p23, 0, %s22
    %s25 = sadd.s32 1, %s16
    %s26 = scalar_select %p23, %s25, %s16
    %p27 = scmp.ge.s32.totalorder %s26, 2
    %s28 = scalar_select %p27, 0, %s26
    %s29 = ssub.s32 %s16, %s28
    %s30 = ssub.s32 %s17, %s24
    %s31 = sor.u32 %s29, %s30
    %p32 = scmp.eq.s32.totalorder %s31, 0
    %s34 = sadd.s32 %s33, 1
    %s35 = scalar_select %p32, %s33, %s34
    %p38 = pneg %p32
    %p39 = scmp.eq.s32.totalorder %s9, 1
    %p40 = por %p38, %p39
    %p41 = scmp.ne.s32.totalorder %s33, %s36
    %p42 = scmp.eq.s32.totalorder %s9, 0
    %p43 = por %p41, %p42
    %p44 = scmp.ne.s32.totalorder %s33, %s36
    %p45 = scmp.eq.s32.totalorder %s14, 1
    %p46 = por %p44, %p45
    %p47 = scmp.ne.s32.totalorder %s36, %s37
    %p48 = scmp.eq.s32.totalorder %s14, 0
    %p49 = por %p47, %p48
    %p50 = scmp.ne.s32.totalorder %s36, %s37
    %p51 = scmp.eq.s32.totalorder %s15, 1
    %p52 = por %p50, %p51
    %p54 = scmp.ne.s32.totalorder %s37, %s53
    %p55 = scmp.eq.s32.totalorder %s15, 0
    %p56 = por %p54, %p55
    %s58 = sadd.s32 %s57, 1
    %p61 = scmp.eq.s32.totalorder %s9, 1
    %p62 = scmp.ne.s32.totalorder %s57, %s59
    %p63 = scmp.eq.s32.totalorder %s9, 0
    %p64 = por %p62, %p63
    %p65 = scmp.ne.s32.totalorder %s57, %s59
    %p66 = scmp.eq.s32.totalorder %s14, 1
    %p67 = por %p65, %p66
    %p68 = scmp.ne.s32.totalorder %s59, %s60
    %p69 = scmp.eq.s32.totalorder %s14, 0
    %p70 = por %p68, %p69
    %p71 = scmp.ne.s32.totalorder %s59, %s60
    %p72 = scmp.eq.s32.totalorder %s15, 1
    %p73 = por %p71, %p72
    %p75 = scmp.ne.s32.totalorder %s60, %s74
    %p76 = scmp.eq.s32.totalorder %s15, 0
    %p77 = por %p75, %p76
    %s79 = sadd.s32 %s78, 1
    %p82 = scmp.eq.s32.totalorder %s9, 1
    %p83 = scmp.ne.s32.totalorder %s78, %s80
    %p84 = scmp.eq.s32.totalorder %s9, 0
    %p85 = por %p83, %p84
    %p86 = scmp.ne.s32.totalorder %s78, %s80
    %p87 = scmp.eq.s32.totalorder %s14, 1
    %p88 = por %p86, %p87
    %p89 = scmp.ne.s32.totalorder %s80, %s81
    %p90 = scmp.eq.s32.totalorder %s14, 0
    %p91 = por %p89, %p90
    %p92 = scmp.ne.s32.totalorder %s80, %s81
    %p93 = scmp.eq.s32.totalorder %s15, 1
    %p94 = por %p92, %p93
    %p96 = scmp.ne.s32.totalorder %s81, %s95
    %p97 = scmp.eq.s32.totalorder %s15, 0
    %p98 = por %p96, %p97
    %s99 = ssub.s32 %s16, %s28
    %s100 = ssub.s32 %s17, %s24
    %s101 = sor.u32 %s99, %s100
    %p102 = scmp.eq.s32.totalorder %s101, 0
    %s104 = sadd.s32 %s103, 1
    %s105 = scalar_select %p102, %s103, %s104
    %p108 = pneg %p102
    %p109 = scmp.eq.s32.totalorder %s9, 1
    %p110 = por %p108, %p109
    %p111 = scmp.ne.s32.totalorder %s103, %s106
    %p112 = scmp.eq.s32.totalorder %s9, 0
    %p113 = por %p111, %p112
    %p114 = scmp.ne.s32.totalorder %s103, %s106
    %p115 = scmp.eq.s32.totalorder %s14, 1
    %p116 = por %p114, %p115
    %p117 = scmp.ne.s32.totalorder %s106, %s107
    %p118 = scmp.eq.s32.totalorder %s14, 0
    %p119 = por %p117, %p118
    %p120 = scmp.ne.s32.totalorder %s106, %s107
    %p121 = scmp.eq.s32.totalorder %s15, 1
    %p122 = por %p120, %p121
    %p124 = scmp.ne.s32.totalorder %s107, %s123
    %p125 = scmp.eq.s32.totalorder %s15, 0
    %p126 = por %p124, %p125
    %p127 = scmp.le.s32.totalorder 1, %s9
    %p128 = scmp.lt.s32.totalorder %s9, 3
    %p129 = pnand %p127, %p128
    %p130 = pneg %p129
    // Predicated region
    $region9: #{_conv_layer_forward_nhwc_impl.1} parent=5 // pred_check
      _
    $region10: #{_conv_layer_forward_nhwc_impl.1} parent=5 // pred_check_branch
      %132 = sbr.rel (%p129) target = $region12
    $region11: #{_conv_layer_forward_nhwc_impl.1} parent=5 // pred_region
      %s133 = ssub.s32 %s9, 1
      // Predicated region
      $region13: #{_conv_layer_forward_nhwc_impl.1} parent=11 // pred_check
        %p134 = pneg %p70
      $region14: #{_conv_layer_forward_nhwc_impl.1} parent=11 // pred_check_branch
        %136 = sbr.rel (%p134) target = $region16
      $region15: #{_conv_layer_forward_nhwc_impl.1} parent=11 // pred_region
        _
      $region16: #{_conv_layer_forward_nhwc_impl.1} parent=11 // pred_fallthru
        _
      // Predicated region
      $region17: #{_conv_layer_forward_nhwc_impl.1} parent=11 // pred_check
        %p137 = pneg %p91
      $region18: #{_conv_layer_forward_nhwc_impl.1} parent=11 // pred_check_branch
        %139 = sbr.rel (%p137) target = $region20
      $region19: #{_conv_layer_forward_nhwc_impl.1} parent=11 // pred_region
        _
      $region20: #{_conv_layer_forward_nhwc_impl.1} parent=11 // pred_fallthru
        _
    $region12: #{_conv_layer_forward_nhwc_impl.1} parent=5 // pred_fallthru
      _
    %p140 = scmp.lt.s32.totalorder %s9, 2
    // Predicated region
    $region21: #{_conv_layer_forward_nhwc_impl.1} parent=5 // pred_check
      %p141 = pneg %p140
    $region22: #{_conv_layer_forward_nhwc_impl.1} parent=5 // pred_check_branch
      %143 = sbr.rel (%p141) target = $region24
    $region23: #{_conv_layer_forward_nhwc_impl.1} parent=5 // pred_region
      // Predicated region
      $region25: #{_conv_layer_forward_nhwc_impl.1} parent=23 // pred_check
        %p144 = pneg %p43
      $region26: #{_conv_layer_forward_nhwc_impl.1} parent=23 // pred_check_branch
        %146 = sbr.rel (%p144) target = $region28
      $region27: #{_conv_layer_forward_nhwc_impl.1} parent=23 // pred_region
        %s147 = smul.u32 26, %s17
        %p148 = scmp.lt.s32.totalorder %s16, 1
        %s149 = scalar_select %p148, %s16, 1
        %p150 = scmp.lt.s32.totalorder %s147, 25
        %s151 = scalar_select %p150, %s147, 25
        %s152 = smul.addr %s149, 26
        %s153 = sadd.s32 %s151, %s152
        %s154 = smul.addr %s153, 8
        %s155 = scalar_lea.vmem %s0, %s154
        %s156 = smul.u32 26, %s17
      $region28: #{_conv_layer_forward_nhwc_impl.1} parent=23 // pred_fallthru
        _
    $region24: #{_conv_layer_forward_nhwc_impl.1} parent=5 // pred_fallthru
      _
    %p157 = scmp.le.s32.totalorder 1, %s9
    %p158 = scmp.lt.s32.totalorder %s9, 3
    %p159 = pnand %p157, %p158
    %p160 = pneg %p159
    // Predicated region
    $region29: #{_conv_layer_forward_nhwc_impl.1} parent=5 // pred_check
      _
    $region30: #{_conv_layer_forward_nhwc_impl.1} parent=5 // pred_check_branch
      %162 = sbr.rel (%p159) target = $region32
    $region31: #{_conv_layer_forward_nhwc_impl.1} parent=5 // pred_region
      %s163 = ssub.s32 %s9, 1
      %s164 = smul.u32 26, %s19
      %p165 = scmp.lt.s32.totalorder %s18, 1
      %s166 = scalar_select %p165, %s18, 1
      %p167 = scmp.lt.s32.totalorder %s164, 25
      %s168 = scalar_select %p167, %s164, 25
      %s169 = smul.addr %s166, 26
      %s170 = sadd.s32 %s168, %s169
      %s171 = smul.addr %s170, 8
      %s172 = scalar_lea.vmem %s0, %s171
      %p173 = pneg %p49
      %p174 = pneg %p46
      %p175 = pneg %p70
      %p176 = pneg %p67
      %p177 = pneg %p91
      %p178 = pneg %p88
      %p179 = pneg %p119
      %p180 = pneg %p116
      %s181 = smul.u32 26, %s19
      %p182 = scmp.lt.s32.totalorder %s18, 1
      %s183 = scalar_select %p182, %s18, 1
      %p184 = scmp.lt.s32.totalorder %s181, 25
      %s185 = scalar_select %p184, %s181, 25
      %s186 = smul.addr %s183, 26
      %s187 = sadd.s32 %s185, %s186
      %s188 = smul.addr %s187, 8
      %s189 = scalar_lea.vmem %s3, %s188
      %s190 = smul.u32 26, %s19
      %p191 = scmp.lt.s32.totalorder %s18, 1
      %s192 = scalar_select %p191, %s18, 1
      %p193 = scmp.lt.s32.totalorder %s190, 25
      %s194 = scalar_select %p193, %s190, 25
      %s195 = smul.addr %s192, 26
      %s196 = sadd.s32 %s194, %s195
      %s197 = smul.addr %s196, 8
      %s198 = scalar_lea.vmem %s0, %s197
      %s199 = smul.u32 26, %s19
      %s200 = smul.u32 26, %s19
      %p201 = scmp.lt.s32.totalorder %s18, 1
      %s202 = scalar_select %p201, %s18, 1
      %p203 = scmp.lt.s32.totalorder %s200, 25
      %s204 = scalar_select %p203, %s200, 25
      %s205 = smul.addr %s202, 26
      %s206 = sadd.s32 %s204, %s205
      %s207 = smul.addr %s206, 8
      %s208 = scalar_lea.vmem %s3, %s207
      %s209 = smul.u32 26, %s19
      %v210 = vld [vmem:[%s198] sm:$0xff]
      %v211 = vld [vmem:[%s198 + $0x8] sm:$0xff]
      %v212 = vld [vmem:[%s198 + $0x10] sm:$0xff]
      %v213 = vld [vmem:[%s198 + $0x18] sm:$0xff]
      %v214 = vld [vmem:[%s198 + $0x20] sm:$0xff]
      %v215 = vld [vmem:[%s198 + $0x28] sm:$0xff]
      %v216 = vld [vmem:[%s198 + $0x30] sm:$0xff]
      %v217 = vld [vmem:[%s198 + $0x38] sm:$0xff]
      %v218 = vld [vmem:[%s198 + $0x40] sm:$0xff]
      %v219 = vld [vmem:[%s198 + $0x48] sm:$0xff]
      %v220 = vld [vmem:[%s198 + $0x50] sm:$0xff]
      %v221 = vld [vmem:[%s198 + $0x58] sm:$0xff]
      %v222 = vld [vmem:[%s198 + $0x60] sm:$0xff]
      %v223 = vld [vmem:[%s198 + $0x68] sm:$0xff]
      %v224 = vld [vmem:[%s198 + $0x70] sm:$0xff]
      %v225 = vld [vmem:[%s198 + $0x78] sm:$0xff]
      %v226 = vld [vmem:[%s198 + $0x80] sm:$0xff]
      %v227 = vld [vmem:[%s198 + $0x88] sm:$0xff]
      %v228 = vld [vmem:[%s198 + $0x90] sm:$0xff]
      %v229 = vld [vmem:[%s198 + $0x98] sm:$0xff]
      %v230 = vld [vmem:[%s198 + $0xa0] sm:$0xff]
      %v231 = vld [vmem:[%s198 + $0xa8] sm:$0xff]
      %v232 = vld [vmem:[%s198 + $0xb0] sm:$0xff]
      %v233 = vld [vmem:[%s198 + $0xb8] sm:$0xff]
      %v234 = vld [vmem:[%s198 + $0xc0] sm:$0xff]
      %v235 = vld [vmem:[%s198 + $0xc8] sm:$0xff]
      %v236 = vld [vmem:[%s1] sm:$0xff]
      %v237 = vld [vmem:[%s1 + $0x8] sm:$0xff]
      %v238 = vld [vmem:[%s1 + $0x10] sm:$0xff]
      %v239 = vld [vmem:[%s1 + $0x18] sm:$0xff]
      %v240 = vld [vmem:[%s1 + $0x20] sm:$0xff]
      %v241 = vld [vmem:[%s1 + $0x28] sm:$0xff]
      %v242 = vld [vmem:[%s1 + $0x30] sm:$0xff]
      %v243 = vld [vmem:[%s1 + $0x38] sm:$0xff]
      %v244 = vld [vmem:[%s1 + $0x40] sm:$0xff]
      %v245 = vld [vmem:[%s1 + $0x48] sm:$0xff]
      %v246 = vld [vmem:[%s1 + $0x50] sm:$0xff]
      %v247 = vld [vmem:[%s1 + $0x58] sm:$0xff]
      %v248 = vld [vmem:[%s1 + $0x60] sm:$0xff]
      %v249 = vld [vmem:[%s1 + $0x68] sm:$0xff]
      %v250 = vld [vmem:[%s1 + $0x70] sm:$0xff]
      %v251 = vld [vmem:[%s1 + $0x78] sm:$0xff]
      %252 = vmatpush.msra.mxu0 %v251
      %253 = vmatpush.msra.mxu0 %v250
      %254 = vmatpush.msra.mxu0 %v249
      %255 = vmatpush.msra.mxu0 %v248
      %256 = vmatpush.msra.mxu0 %v247
      %257 = vmatpush.msra.mxu0 %v246
      %258 = vmatpush.msra.mxu0 %v245
      %259 = vmatpush.msra.mxu0 %v244
      %260 = vmatpush.msra.mxu0 %v243
      %261 = vmatpush.msra.mxu0 %v242
      %262 = vmatpush.msra.mxu0 %v241
      %263 = vmatpush.msra.mxu0 %v240
      %264 = vmatpush.msra.mxu0 %v239
      %265 = vmatpush.msra.mxu0 %v238
      %266 = vmatpush.msra.mxu0 %v237
      %267 = vmatpush.msra.mxu0 %v236
      %268 = vmatmul.f32.gmra.mxu0 %v210
      %v269 = vpop.f32.mrf.mxu0
      %v270 = vadd.f32 0.0, %v269
      %271 = vmatmul.f32.gmra.mxu0 %v211
      %v272 = vpop.f32.mrf.mxu0
      %v273 = vadd.f32 0.0, %v272
      %274 = vmatmul.f32.gmra.mxu0 %v212
      %v275 = vpop.f32.mrf.mxu0
      %v276 = vadd.f32 0.0, %v275
      %277 = vmatmul.f32.gmra.mxu0 %v213
      %v278 = vpop.f32.mrf.mxu0
      %v279 = vadd.f32 0.0, %v278
      %280 = vmatmul.f32.gmra.mxu0 %v214
      %v281 = vpop.f32.mrf.mxu0
      %v282 = vadd.f32 0.0, %v281
      %283 = vmatmul.f32.gmra.mxu0 %v215
      %v284 = vpop.f32.mrf.mxu0
      %v285 = vadd.f32 0.0, %v284
      %286 = vmatmul.f32.gmra.mxu0 %v216
      %v287 = vpop.f32.mrf.mxu0
      %v288 = vadd.f32 0.0, %v287
      %289 = vmatmul.f32.gmra.mxu0 %v217
      %v290 = vpop.f32.mrf.mxu0
      %v291 = vadd.f32 0.0, %v290
      %292 = vmatmul.f32.gmra.mxu0 %v218
      %v293 = vpop.f32.mrf.mxu0
      %v294 = vadd.f32 0.0, %v293
      %295 = vmatmul.f32.gmra.mxu0 %v219
      %v296 = vpop.f32.mrf.mxu0
      %v297 = vadd.f32 0.0, %v296
      %298 = vmatmul.f32.gmra.mxu0 %v220
      %v299 = vpop.f32.mrf.mxu0
      %v300 = vadd.f32 0.0, %v299
      %301 = vmatmul.f32.gmra.mxu0 %v221
      %v302 = vpop.f32.mrf.mxu0
      %v303 = vadd.f32 0.0, %v302
      %304 = vmatmul.f32.gmra.mxu0 %v222
      %v305 = vpop.f32.mrf.mxu0
      %v306 = vadd.f32 0.0, %v305
      %307 = vmatmul.f32.gmra.mxu0 %v223
      %v308 = vpop.f32.mrf.mxu0
      %v309 = vadd.f32 0.0, %v308
      %310 = vmatmul.f32.gmra.mxu0 %v224
      %v311 = vpop.f32.mrf.mxu0
      %v312 = vadd.f32 0.0, %v311
      %313 = vmatmul.f32.gmra.mxu0 %v225
      %v314 = vpop.f32.mrf.mxu0
      %v315 = vadd.f32 0.0, %v314
      %316 = vmatmul.f32.gmra.mxu0 %v226
      %v317 = vpop.f32.mrf.mxu0
      %v318 = vadd.f32 0.0, %v317
      %319 = vmatmul.f32.gmra.mxu0 %v227
      %v320 = vpop.f32.mrf.mxu0
      %v321 = vadd.f32 0.0, %v320
      %322 = vmatmul.f32.gmra.mxu0 %v228
      %v323 = vpop.f32.mrf.mxu0
      %v324 = vadd.f32 0.0, %v323
      %325 = vmatmul.f32.gmra.mxu0 %v229
      %v326 = vpop.f32.mrf.mxu0
      %v327 = vadd.f32 0.0, %v326
      %328 = vmatmul.f32.gmra.mxu0 %v230
      %v329 = vpop.f32.mrf.mxu0
      %v330 = vadd.f32 0.0, %v329
      %331 = vmatmul.f32.gmra.mxu0 %v231
      %v332 = vpop.f32.mrf.mxu0
      %v333 = vadd.f32 0.0, %v332
      %334 = vmatmul.f32.gmra.mxu0 %v232
      %v335 = vpop.f32.mrf.mxu0
      %v336 = vadd.f32 0.0, %v335
      %337 = vmatmul.f32.gmra.mxu0 %v233
      %v338 = vpop.f32.mrf.mxu0
      %v339 = vadd.f32 0.0, %v338
      %340 = vmatmul.f32.gmra.mxu0 %v234
      %v341 = vpop.f32.mrf.mxu0
      %v342 = vadd.f32 0.0, %v341
      %343 = vmatmul.f32.gmra.mxu0 %v235
      %v344 = vpop.f32.mrf.mxu0
      %v345 = vadd.f32 0.0, %v344
      %346 = vdwg.mxu0
      %v347 = vld [vmem:[%s2] sm:$0x1]
      %v348 = vld [vmem:[%s2 + $0x1] sm:$0x1]
      %v349 = vperm.slane %v347, 0
      %v350 = vmul.f32 %v270, %v349
      %v351 = vmul.f32 %v273, %v349
      %v352 = vmul.f32 %v276, %v349
      %v353 = vmul.f32 %v279, %v349
      %v354 = vmul.f32 %v282, %v349
      %v355 = vmul.f32 %v285, %v349
      %v356 = vmul.f32 %v288, %v349
      %v357 = vmul.f32 %v291, %v349
      %v358 = vmul.f32 %v294, %v349
      %v359 = vmul.f32 %v297, %v349
      %v360 = vmul.f32 %v300, %v349
      %v361 = vmul.f32 %v303, %v349
      %v362 = vmul.f32 %v306, %v349
      %v363 = vmul.f32 %v309, %v349
      %v364 = vmul.f32 %v312, %v349
      %v365 = vmul.f32 %v315, %v349
      %v366 = vmul.f32 %v318, %v349
      %v367 = vmul.f32 %v321, %v349
      %v368 = vmul.f32 %v324, %v349
      %v369 = vmul.f32 %v327, %v349
      %v370 = vmul.f32 %v330, %v349
      %v371 = vmul.f32 %v333, %v349
      %v372 = vmul.f32 %v336, %v349
      %v373 = vmul.f32 %v339, %v349
      %v374 = vmul.f32 %v342, %v349
      %v375 = vmul.f32 %v345, %v349
      %v376 = vperm.slane %v348, 0
      %v377 = vadd.f32 %v350, %v376
      %v378 = vadd.f32 %v351, %v376
      %v379 = vadd.f32 %v352, %v376
      %v380 = vadd.f32 %v353, %v376
      %v381 = vadd.f32 %v354, %v376
      %v382 = vadd.f32 %v355, %v376
      %v383 = vadd.f32 %v356, %v376
      %v384 = vadd.f32 %v357, %v376
      %v385 = vadd.f32 %v358, %v376
      %v386 = vadd.f32 %v359, %v376
      %v387 = vadd.f32 %v360, %v376
      %v388 = vadd.f32 %v361, %v376
      %v389 = vadd.f32 %v362, %v376
      %v390 = vadd.f32 %v363, %v376
      %v391 = vadd.f32 %v364, %v376
      %v392 = vadd.f32 %v365, %v376
      %v393 = vadd.f32 %v366, %v376
      %v394 = vadd.f32 %v367, %v376
      %v395 = vadd.f32 %v368, %v376
      %v396 = vadd.f32 %v369, %v376
      %v397 = vadd.f32 %v370, %v376
      %v398 = vadd.f32 %v371, %v376
      %v399 = vadd.f32 %v372, %v376
      %v400 = vadd.f32 %v373, %v376
      %v401 = vadd.f32 %v374, %v376
      %v402 = vadd.f32 %v375, %v376
      %v403 = vmax.f32 %v377, 0.0
      %v404 = vmax.f32 %v378, 0.0
      %v405 = vmax.f32 %v379, 0.0
      %v406 = vmax.f32 %v380, 0.0
      %v407 = vmax.f32 %v381, 0.0
      %v408 = vmax.f32 %v382, 0.0
      %v409 = vmax.f32 %v383, 0.0
      %v410 = vmax.f32 %v384, 0.0
      %v411 = vmax.f32 %v385, 0.0
      %v412 = vmax.f32 %v386, 0.0
      %v413 = vmax.f32 %v387, 0.0
      %v414 = vmax.f32 %v388, 0.0
      %v415 = vmax.f32 %v389, 0.0
      %v416 = vmax.f32 %v390, 0.0
      %v417 = vmax.f32 %v391, 0.0
      %v418 = vmax.f32 %v392, 0.0
      %v419 = vmax.f32 %v393, 0.0
      %v420 = vmax.f32 %v394, 0.0
      %v421 = vmax.f32 %v395, 0.0
      %v422 = vmax.f32 %v396, 0.0
      %v423 = vmax.f32 %v397, 0.0
      %v424 = vmax.f32 %v398, 0.0
      %v425 = vmax.f32 %v399, 0.0
      %v426 = vmax.f32 %v400, 0.0
      %v427 = vmax.f32 %v401, 0.0
      %v428 = vmax.f32 %v402, 0.0
      %vm429 = vcmask 64512
      %430 = vst.msk [vmem:[%s208] sm:$0xff] %vm429, %v403
      %431 = vst.msk [vmem:[%s208 + $0x8] sm:$0xff] %vm429, %v404
      %432 = vst.msk [vmem:[%s208 + $0x10] sm:$0xff] %vm429, %v405
      %433 = vst.msk [vmem:[%s208 + $0x18] sm:$0xff] %vm429, %v406
      %434 = vst.msk [vmem:[%s208 + $0x20] sm:$0xff] %vm429, %v407
      %435 = vst.msk [vmem:[%s208 + $0x28] sm:$0xff] %vm429, %v408
      %436 = vst.msk [vmem:[%s208 + $0x30] sm:$0xff] %vm429, %v409
      %437 = vst.msk [vmem:[%s208 + $0x38] sm:$0xff] %vm429, %v410
      %438 = vst.msk [vmem:[%s208 + $0x40] sm:$0xff] %vm429, %v411
      %439 = vst.msk [vmem:[%s208 + $0x48] sm:$0xff] %vm429, %v412
      %440 = vst.msk [vmem:[%s208 + $0x50] sm:$0xff] %vm429, %v413
      %441 = vst.msk [vmem:[%s208 + $0x58] sm:$0xff] %vm429, %v414
      %442 = vst.msk [vmem:[%s208 + $0x60] sm:$0xff] %vm429, %v415
      %443 = vst.msk [vmem:[%s208 + $0x68] sm:$0xff] %vm429, %v416
      %444 = vst.msk [vmem:[%s208 + $0x70] sm:$0xff] %vm429, %v417
      %445 = vst.msk [vmem:[%s208 + $0x78] sm:$0xff] %vm429, %v418
      %446 = vst.msk [vmem:[%s208 + $0x80] sm:$0xff] %vm429, %v419
      %447 = vst.msk [vmem:[%s208 + $0x88] sm:$0xff] %vm429, %v420
      %448 = vst.msk [vmem:[%s208 + $0x90] sm:$0xff] %vm429, %v421
      %449 = vst.msk [vmem:[%s208 + $0x98] sm:$0xff] %vm429, %v422
      %450 = vst.msk [vmem:[%s208 + $0xa0] sm:$0xff] %vm429, %v423
      %451 = vst.msk [vmem:[%s208 + $0xa8] sm:$0xff] %vm429, %v424
      %452 = vst.msk [vmem:[%s208 + $0xb0] sm:$0xff] %vm429, %v425
      %453 = vst.msk [vmem:[%s208 + $0xb8] sm:$0xff] %vm429, %v426
      %454 = vst.msk [vmem:[%s208 + $0xc0] sm:$0xff] %vm429, %v427
      %455 = vst.msk [vmem:[%s208 + $0xc8] sm:$0xff] %vm429, %v428
      %s456 = smul.u32 26, %s19
      %p457 = scmp.lt.s32.totalorder %s18, 1
      %s458 = scalar_select %p457, %s18, 1
      %p459 = scmp.lt.s32.totalorder %s456, 25
      %s460 = scalar_select %p459, %s456, 25
      %s461 = smul.addr %s458, 26
      %s462 = sadd.s32 %s460, %s461
      %s463 = smul.addr %s462, 8
      %s464 = scalar_lea.vmem %s3, %s463
      // Predicated region
      $region33: #{_conv_layer_forward_nhwc_impl.1} parent=31 // pred_check
        %p465 = pneg %p116
      $region34: #{_conv_layer_forward_nhwc_impl.1} parent=31 // pred_check_branch
        %467 = sbr.rel (%p465) target = $region36
      $region35: #{_conv_layer_forward_nhwc_impl.1} parent=31 // pred_region
        %s468 = smul.u32 26, %s19
      $region36: #{_conv_layer_forward_nhwc_impl.1} parent=31 // pred_fallthru
        _
    $region32: #{_conv_layer_forward_nhwc_impl.1} parent=5 // pred_fallthru
      _
    %p469 = scmp.le.s32.totalorder 2, %s9
    // Predicated region
    $region37: #{_conv_layer_forward_nhwc_impl.1} parent=5 // pred_check
      %p470 = pneg %p469
    $region38: #{_conv_layer_forward_nhwc_impl.1} parent=5 // pred_check_branch
      %472 = sbr.rel (%p470) target = $region40
    $region39: #{_conv_layer_forward_nhwc_impl.1} parent=5 // pred_region
      %s473 = ssub.s32 %s9, 2
      // Predicated region
      $region41: #{_conv_layer_forward_nhwc_impl.1} parent=39 // pred_check
        %p474 = pneg %p122
      $region42: #{_conv_layer_forward_nhwc_impl.1} parent=39 // pred_check_branch
        %476 = sbr.rel (%p474) target = $region44
      $region43: #{_conv_layer_forward_nhwc_impl.1} parent=39 // pred_region
        %s477 = smul.u32 26, %s21
        %p478 = scmp.lt.s32.totalorder %s20, 1
        %s479 = scalar_select %p478, %s20, 1
        %p480 = scmp.lt.s32.totalorder %s477, 25
        %s481 = scalar_select %p480, %s477, 25
        %s482 = smul.addr %s479, 26
        %s483 = sadd.s32 %s481, %s482
        %s484 = smul.addr %s483, 8
        %s485 = scalar_lea.vmem %s3, %s484
      $region44: #{_conv_layer_forward_nhwc_impl.1} parent=39 // pred_fallthru
        _
    $region40: #{_conv_layer_forward_nhwc_impl.1} parent=5 // pred_fallthru
      _
  $region6: #{_conv_layer_forward_nhwc_impl.1} parent=0 // loop_footer
    %s13 = sadd.s32 1, %s9
  $region7: #{_conv_layer_forward_nhwc_impl.1} parent=0 // loop_footer_branch
    %8 = sbr.rel target = $region3
  $region8: #{_conv_layer_forward_nhwc_impl.1} parent=0 // loop_exit
    _

// kernel: _conv_layer_forward_nhwc_impl.1
$region0: #{_conv_layer_forward_nhwc_impl.1}
  #allocation0 [shape = 'u32[]', space=smem, size = 0x4, offset = 0x4, fixed_abs, tag = 'smem constant byte address 0x4 - core index']
  #allocation1 [shape = 'u32[72,128]{1,0:T(1,128)}', space=vmem, size = 0x9000, scoped, tag = 'internal scratch']
  %s0 = inlined_call_operand.vmem [shape: f32[2,208,128], index: 0, kind: input, shape index: {}]
  %s1 = inlined_call_operand.vmem [shape: f32[128,8], index: 1, kind: input, shape index: {}]
  %s2 = inlined_call_operand.vmem [shape: f32[2,8], index: 2, kind: input, shape index: {}]
  %s3 = inlined_call_operand.vmem [shape: f32[2,208,8], index: 3, kind: output, shape index: {}]
  %s4 = sld [smem:[#allocation0]]
  $region45: #{_conv_layer_forward_nhwc_impl.1} parent=0
    _
  %s6 = ssub.s32 1, %s4
  %s7 = scalar_select 0, %s6, %s4
  loop: start=0, step=1, limit=4
  $region2: #{_conv_layer_forward_nhwc_impl.1} parent=0 // loop_pre_header
    _
  $region3: #{_conv_layer_forward_nhwc_impl.1} parent=0 // loop_header
    %s9 = sphi 0, %s13
    %p10 = scmp.ge.s32.totalorder %s9, 4
    %s16 = sphi 0, %s28
    %s17 = sphi 0, %s24
    %s18 = sphi 0, %s16
    %s19 = sphi 0, %s17
    %s20 = sphi 0, %s18
    %s21 = sphi 0, %s19
    %s33 = sphi 0, %s35
    %s36 = sphi 0, %s33
    %s37 = sphi 0, %s36
    %s53 = sphi 0, %s37
    %s57 = sphi 0, %s57
    %s59 = sphi 0, %s57
    %s60 = sphi 0, %s59
    %s74 = sphi 0, %s60
    %s78 = sphi 0, %s78
    %s80 = sphi 0, %s78
    %s81 = sphi 0, %s80
    %s95 = sphi 0, %s81
    %s103 = sphi 0, %s105
    %s106 = sphi 0, %s103
    %s107 = sphi 0, %s106
    %s123 = sphi 0, %s107
  $region4: #{_conv_layer_forward_nhwc_impl.1} parent=0 // loop_header_branch
    %12 = sbr.rel (%p10) target = $region8
  $region5: #{_conv_layer_forward_nhwc_impl.1} parent=0 // loop_body
    %s14 = ssub.s32 %s9, 1
    %s15 = ssub.s32 %s9, 2
    %s22 = sadd.s32 1, %s17
    %p23 = scmp.ge.s32.totalorder %s22, 1
    %s24 = scalar_select %p23, 0, %s22
    %s25 = sadd.s32 1, %s16
    %s26 = scalar_select %p23, %s25, %s16
    %p27 = scmp.ge.s32.totalorder %s26, 2
    %s28 = scalar_select %p27, 0, %s26
    %s29 = ssub.s32 %s16, %s28
    %s30 = ssub.s32 %s17, %s24
    %s31 = sor.u32 %s29, %s30
    %p32 = scmp.eq.s32.totalorder %s31, 0
    %s34 = sadd.s32 %s33, 1
    %s35 = scalar_select %p32, %s33, %s34
    %p38 = pneg %p32
    %p39 = scmp.eq.s32.totalorder %s9, 1
    %p40 = por %p38, %p39
    %p41 = scmp.ne.s32.totalorder %s33, %s36
    %p42 = scmp.eq.s32.totalorder %s9, 0
    %p43 = por %p41, %p42
    %p44 = scmp.ne.s32.totalorder %s33, %s36
    %p45 = scmp.eq.s32.totalorder %s14, 1
    %p46 = por %p44, %p45
    %p47 = scmp.ne.s32.totalorder %s36, %s37
    %p48 = scmp.eq.s32.totalorder %s14, 0
    %p49 = por %p47, %p48
    %p50 = scmp.ne.s32.totalorder %s36, %s37
    %p51 = scmp.eq.s32.totalorder %s15, 1
    %p52 = por %p50, %p51
    %p54 = scmp.ne.s32.totalorder %s37, %s53
    %p55 = scmp.eq.s32.totalorder %s15, 0
    %p56 = por %p54, %p55
    %s58 = sadd.s32 %s57, 1
    %p61 = scmp.eq.s32.totalorder %s9, 1
    %p62 = scmp.ne.s32.totalorder %s57, %s59
    %p63 = scmp.eq.s32.totalorder %s9, 0
    %p64 = por %p62, %p63
    %p65 = scmp.ne.s32.totalorder %s57, %s59
    %p66 = scmp.eq.s32.totalorder %s14, 1
    %p67 = por %p65, %p66
    %p68 = scmp.ne.s32.totalorder %s59, %s60
    %p69 = scmp.eq.s32.totalorder %s14, 0
    %p70 = por %p68, %p69
    %p71 = scmp.ne.s32.totalorder %s59, %s60
    %p72 = scmp.eq.s32.totalorder %s15, 1
    %p73 = por %p71, %p72
    %p75 = scmp.ne.s32.totalorder %s60, %s74
    %p76 = scmp.eq.s32.totalorder %s15, 0
    %p77 = por %p75, %p76
    %s79 = sadd.s32 %s78, 1
    %p82 = scmp.eq.s32.totalorder %s9, 1
    %p83 = scmp.ne.s32.totalorder %s78, %s80
    %p84 = scmp.eq.s32.totalorder %s9, 0
    %p85 = por %p83, %p84
    %p86 = scmp.ne.s32.totalorder %s78, %s80
    %p87 = scmp.eq.s32.totalorder %s14, 1
    %p88 = por %p86, %p87
    %p89 = scmp.ne.s32.totalorder %s80, %s81
    %p90 = scmp.eq.s32.totalorder %s14, 0
    %p91 = por %p89, %p90
    %p92 = scmp.ne.s32.totalorder %s80, %s81
    %p93 = scmp.eq.s32.totalorder %s15, 1
    %p94 = por %p92, %p93
    %p96 = scmp.ne.s32.totalorder %s81, %s95
    %p97 = scmp.eq.s32.totalorder %s15, 0
    %p98 = por %p96, %p97
    %s99 = ssub.s32 %s16, %s28
    %s100 = ssub.s32 %s17, %s24
    %s101 = sor.u32 %s99, %s100
    %p102 = scmp.eq.s32.totalorder %s101, 0
    %s104 = sadd.s32 %s103, 1
    %s105 = scalar_select %p102, %s103, %s104
    %p108 = pneg %p102
    %p109 = scmp.eq.s32.totalorder %s9, 1
    %p110 = por %p108, %p109
    %p111 = scmp.ne.s32.totalorder %s103, %s106
    %p112 = scmp.eq.s32.totalorder %s9, 0
    %p113 = por %p111, %p112
    %p114 = scmp.ne.s32.totalorder %s103, %s106
    %p115 = scmp.eq.s32.totalorder %s14, 1
    %p116 = por %p114, %p115
    %p117 = scmp.ne.s32.totalorder %s106, %s107
    %p118 = scmp.eq.s32.totalorder %s14, 0
    %p119 = por %p117, %p118
    %p120 = scmp.ne.s32.totalorder %s106, %s107
    %p121 = scmp.eq.s32.totalorder %s15, 1
    %p122 = por %p120, %p121
    %p124 = scmp.ne.s32.totalorder %s107, %s123
    %p125 = scmp.eq.s32.totalorder %s15, 0
    %p126 = por %p124, %p125
    %p127 = scmp.le.s32.totalorder 1, %s9
    %p128 = scmp.lt.s32.totalorder %s9, 3
    %p129 = pnand %p127, %p128
    %p130 = pneg %p129
    // Predicated region
    $region9: #{_conv_layer_forward_nhwc_impl.1} parent=5 // pred_check
      _
    $region10: #{_conv_layer_forward_nhwc_impl.1} parent=5 // pred_check_branch
      %132 = sbr.rel (%p129) target = $region12
    $region11: #{_conv_layer_forward_nhwc_impl.1} parent=5 // pred_region
      %s133 = ssub.s32 %s9, 1
      // Predicated region
      $region13: #{_conv_layer_forward_nhwc_impl.1} parent=11 // pred_check
        %p134 = pneg %p70
      $region14: #{_conv_layer_forward_nhwc_impl.1} parent=11 // pred_check_branch
        %136 = sbr.rel (%p134) target = $region16
      $region15: #{_conv_layer_forward_nhwc_impl.1} parent=11 // pred_region
        _
      $region16: #{_conv_layer_forward_nhwc_impl.1} parent=11 // pred_fallthru
        _
      // Predicated region
      $region17: #{_conv_layer_forward_nhwc_impl.1} parent=11 // pred_check
        %p137 = pneg %p91
      $region18: #{_conv_layer_forward_nhwc_impl.1} parent=11 // pred_check_branch
        %139 = sbr.rel (%p137) target = $region20
      $region19: #{_conv_layer_forward_nhwc_impl.1} parent=11 // pred_region
        _
      $region20: #{_conv_layer_forward_nhwc_impl.1} parent=11 // pred_fallthru
        _
    $region12: #{_conv_layer_forward_nhwc_impl.1} parent=5 // pred_fallthru
      _
    %p140 = scmp.lt.s32.totalorder %s9, 2
    // Predicated region
    $region21: #{_conv_layer_forward_nhwc_impl.1} parent=5 // pred_check
      %p141 = pneg %p140
    $region22: #{_conv_layer_forward_nhwc_impl.1} parent=5 // pred_check_branch
      %143 = sbr.rel (%p141) target = $region24
    $region23: #{_conv_layer_forward_nhwc_impl.1} parent=5 // pred_region
      // Predicated region
      $region25: #{_conv_layer_forward_nhwc_impl.1} parent=23 // pred_check
        %p144 = pneg %p43
      $region26: #{_conv_layer_forward_nhwc_impl.1} parent=23 // pred_check_branch
        %146 = sbr.rel (%p144) target = $region28
      $region27: #{_conv_layer_forward_nhwc_impl.1} parent=23 // pred_region
        %s147 = smul.u32 26, %s17
        %p148 = scmp.lt.s32.totalorder %s16, 1
        %s149 = scalar_select %p148, %s16, 1
        %p150 = scmp.lt.s32.totalorder %s147, 25
        %s151 = scalar_select %p150, %s147, 25
        %s152 = smul.addr %s149, 26
        %s153 = sadd.s32 %s151, %s152
        %s154 = smul.addr %s153, 8
        %s155 = scalar_lea.vmem %s0, %s154
        %s156 = smul.u32 26, %s17
      $region28: #{_conv_layer_forward_nhwc_impl.1} parent=23 // pred_fallthru
        _
    $region24: #{_conv_layer_forward_nhwc_impl.1} parent=5 // pred_fallthru
      _
    %p157 = scmp.le.s32.totalorder 1, %s9
    %p158 = scmp.lt.s32.totalorder %s9, 3
    %p159 = pnand %p157, %p158
    %p160 = pneg %p159
    // Predicated region
    $region29: #{_conv_layer_forward_nhwc_impl.1} parent=5 // pred_check
      _
    $region30: #{_conv_layer_forward_nhwc_impl.1} parent=5 // pred_check_branch
      %162 = sbr.rel (%p159) target = $region32
    $region31: #{_conv_layer_forward_nhwc_impl.1} parent=5 // pred_region
      %s163 = ssub.s32 %s9, 1
      %s164 = smul.u32 26, %s19
      %p165 = scmp.lt.s32.totalorder %s18, 1
      %s166 = scalar_select %p165, %s18, 1
      %p167 = scmp.lt.s32.totalorder %s164, 25
      %s168 = scalar_select %p167, %s164, 25
      %s169 = smul.addr %s166, 26
      %s170 = sadd.s32 %s168, %s169
      %s171 = smul.addr %s170, 8
      %s172 = scalar_lea.vmem %s0, %s171
      %p173 = pneg %p49
      %p174 = pneg %p46
      %p175 = pneg %p70
      %p176 = pneg %p67
      %p177 = pneg %p91
      %p178 = pneg %p88
      %p179 = pneg %p119
      %p180 = pneg %p116
      %s181 = smul.u32 26, %s19
      %p182 = scmp.lt.s32.totalorder %s18, 1
      %s183 = scalar_select %p182, %s18, 1
      %p184 = scmp.lt.s32.totalorder %s181, 25
      %s185 = scalar_select %p184, %s181, 25
      %s186 = smul.addr %s183, 26
      %s187 = sadd.s32 %s185, %s186
      %s188 = smul.addr %s187, 8
      %s189 = scalar_lea.vmem %s3, %s188
      %s190 = smul.u32 26, %s19
      %p191 = scmp.lt.s32.totalorder %s18, 1
      %s192 = scalar_select %p191, %s18, 1
      %p193 = scmp.lt.s32.totalorder %s190, 25
      %s194 = scalar_select %p193, %s190, 25
      %s195 = smul.addr %s192, 26
      %s196 = sadd.s32 %s194, %s195
      %s197 = smul.addr %s196, 8
      %s198 = scalar_lea.vmem %s0, %s197
      %s199 = smul.u32 26, %s19
      %s200 = smul.u32 26, %s19
      %p201 = scmp.lt.s32.totalorder %s18, 1
      %s202 = scalar_select %p201, %s18, 1
      %p203 = scmp.lt.s32.totalorder %s200, 25
      %s204 = scalar_select %p203, %s200, 25
      %s205 = smul.addr %s202, 26
      %s206 = sadd.s32 %s204, %s205
      %s207 = smul.addr %s206, 8
      %s208 = scalar_lea.vmem %s3, %s207
      %s209 = smul.u32 26, %s19
      %v210 = vld [vmem:[%s198] sm:$0xff]
      %v211 = vld [vmem:[%s198 + $0x8] sm:$0xff]
      %v212 = vld [vmem:[%s198 + $0x10] sm:$0xff]
      %v213 = vld [vmem:[%s198 + $0x18] sm:$0xff]
      %v214 = vld [vmem:[%s198 + $0x20] sm:$0xff]
      %v215 = vld [vmem:[%s198 + $0x28] sm:$0xff]
      %v216 = vld [vmem:[%s198 + $0x30] sm:$0xff]
      %v217 = vld [vmem:[%s198 + $0x38] sm:$0xff]
      %v218 = vld [vmem:[%s198 + $0x40] sm:$0xff]
      %v219 = vld [vmem:[%s198 + $0x48] sm:$0xff]
      %v220 = vld [vmem:[%s198 + $0x50] sm:$0xff]
      %v221 = vld [vmem:[%s198 + $0x58] sm:$0xff]
      %v222 = vld [vmem:[%s198 + $0x60] sm:$0xff]
      %v223 = vld [vmem:[%s198 + $0x68] sm:$0xff]
      %v224 = vld [vmem:[%s198 + $0x70] sm:$0xff]
      %v225 = vld [vmem:[%s198 + $0x78] sm:$0xff]
      %v226 = vld [vmem:[%s198 + $0x80] sm:$0xff]
      %v227 = vld [vmem:[%s198 + $0x88] sm:$0xff]
      %v228 = vld [vmem:[%s198 + $0x90] sm:$0xff]
      %v229 = vld [vmem:[%s198 + $0x98] sm:$0xff]
      %v230 = vld [vmem:[%s198 + $0xa0] sm:$0xff]
      %v231 = vld [vmem:[%s198 + $0xa8] sm:$0xff]
      %v232 = vld [vmem:[%s198 + $0xb0] sm:$0xff]
      %v233 = vld [vmem:[%s198 + $0xb8] sm:$0xff]
      %v234 = vld [vmem:[%s198 + $0xc0] sm:$0xff]
      %v235 = vld [vmem:[%s198 + $0xc8] sm:$0xff]
      %v236 = vld [vmem:[%s1] sm:$0xff]
      %v237 = vld [vmem:[%s1 + $0x8] sm:$0xff]
      %v238 = vld [vmem:[%s1 + $0x10] sm:$0xff]
      %v239 = vld [vmem:[%s1 + $0x18] sm:$0xff]
      %v240 = vld [vmem:[%s1 + $0x20] sm:$0xff]
      %v241 = vld [vmem:[%s1 + $0x28] sm:$0xff]
      %v242 = vld [vmem:[%s1 + $0x30] sm:$0xff]
      %v243 = vld [vmem:[%s1 + $0x38] sm:$0xff]
      %v244 = vld [vmem:[%s1 + $0x40] sm:$0xff]
      %v245 = vld [vmem:[%s1 + $0x48] sm:$0xff]
      %v246 = vld [vmem:[%s1 + $0x50] sm:$0xff]
      %v247 = vld [vmem:[%s1 + $0x58] sm:$0xff]
      %v248 = vld [vmem:[%s1 + $0x60] sm:$0xff]
      %v249 = vld [vmem:[%s1 + $0x68] sm:$0xff]
      %v250 = vld [vmem:[%s1 + $0x70] sm:$0xff]
      %v251 = vld [vmem:[%s1 + $0x78] sm:$0xff]
      %252 = vmatpush.msra.mxu0 %v251
      %253 = vmatpush.msra.mxu0 %v250
      %254 = vmatpush.msra.mxu0 %v249
      %255 = vmatpush.msra.mxu0 %v248
      %256 = vmatpush.msra.mxu0 %v247
      %257 = vmatpush.msra.mxu0 %v246
      %258 = vmatpush.msra.mxu0 %v245
      %259 = vmatpush.msra.mxu0 %v244
      %260 = vmatpush.msra.mxu0 %v243
      %261 = vmatpush.msra.mxu0 %v242
      %262 = vmatpush.msra.mxu0 %v241
      %263 = vmatpush.msra.mxu0 %v240
      %264 = vmatpush.msra.mxu0 %v239
      %265 = vmatpush.msra.mxu0 %v238
      %266 = vmatpush.msra.mxu0 %v237
      %267 = vmatpush.msra.mxu0 %v236
      %268 = vmatmul.f32.gmra.mxu0 %v210
      %v269 = vpop.f32.mrf.mxu0
      %v270 = vadd.f32 0.0, %v269
      %271 = vmatmul.f32.gmra.mxu0 %v211
      %v272 = vpop.f32.mrf.mxu0
      %v273 = vadd.f32 0.0, %v272
      %274 = vmatmul.f32.gmra.mxu0 %v212
      %v275 = vpop.f32.mrf.mxu0
      %v276 = vadd.f32 0.0, %v275
      %277 = vmatmul.f32.gmra.mxu0 %v213
      %v278 = vpop.f32.mrf.mxu0
      %v279 = vadd.f32 0.0, %v278
      %280 = vmatmul.f32.gmra.mxu0 %v214
      %v281 = vpop.f32.mrf.mxu0
      %v282 = vadd.f32 0.0, %v281
      %283 = vmatmul.f32.gmra.mxu0 %v215
      %v284 = vpop.f32.mrf.mxu0
      %v285 = vadd.f32 0.0, %v284
      %286 = vmatmul.f32.gmra.mxu0 %v216
      %v287 = vpop.f32.mrf.mxu0
      %v288 = vadd.f32 0.0, %v287
      %289 = vmatmul.f32.gmra.mxu0 %v217
      %v290 = vpop.f32.mrf.mxu0
      %v291 = vadd.f32 0.0, %v290
      %292 = vmatmul.f32.gmra.mxu0 %v218
      %v293 = vpop.f32.mrf.mxu0
      %v294 = vadd.f32 0.0, %v293
      %295 = vmatmul.f32.gmra.mxu0 %v219
      %v296 = vpop.f32.mrf.mxu0
      %v297 = vadd.f32 0.0, %v296
      %298 = vmatmul.f32.gmra.mxu0 %v220
      %v299 = vpop.f32.mrf.mxu0
      %v300 = vadd.f32 0.0, %v299
      %301 = vmatmul.f32.gmra.mxu0 %v221
      %v302 = vpop.f32.mrf.mxu0
      %v303 = vadd.f32 0.0, %v302
      %304 = vmatmul.f32.gmra.mxu0 %v222
      %v305 = vpop.f32.mrf.mxu0
      %v306 = vadd.f32 0.0, %v305
      %307 = vmatmul.f32.gmra.mxu0 %v223
      %v308 = vpop.f32.mrf.mxu0
      %v309 = vadd.f32 0.0, %v308
      %310 = vmatmul.f32.gmra.mxu0 %v224
      %v311 = vpop.f32.mrf.mxu0
      %v312 = vadd.f32 0.0, %v311
      %313 = vmatmul.f32.gmra.mxu0 %v225
      %v314 = vpop.f32.mrf.mxu0
      %v315 = vadd.f32 0.0, %v314
      %316 = vmatmul.f32.gmra.mxu0 %v226
      %v317 = vpop.f32.mrf.mxu0
      %v318 = vadd.f32 0.0, %v317
      %319 = vmatmul.f32.gmra.mxu0 %v227
      %v320 = vpop.f32.mrf.mxu0
      %v321 = vadd.f32 0.0, %v320
      %322 = vmatmul.f32.gmra.mxu0 %v228
      %v323 = vpop.f32.mrf.mxu0
      %v324 = vadd.f32 0.0, %v323
      %325 = vmatmul.f32.gmra.mxu0 %v229
      %v326 = vpop.f32.mrf.mxu0
      %v327 = vadd.f32 0.0, %v326
      %328 = vmatmul.f32.gmra.mxu0 %v230
      %v329 = vpop.f32.mrf.mxu0
      %v330 = vadd.f32 0.0, %v329
      %331 = vmatmul.f32.gmra.mxu0 %v231
      %v332 = vpop.f32.mrf.mxu0
      %v333 = vadd.f32 0.0, %v332
      %334 = vmatmul.f32.gmra.mxu0 %v232
      %v335 = vpop.f32.mrf.mxu0
      %v336 = vadd.f32 0.0, %v335
      %337 = vmatmul.f32.gmra.mxu0 %v233
      %v338 = vpop.f32.mrf.mxu0
      %v339 = vadd.f32 0.0, %v338
      %340 = vmatmul.f32.gmra.mxu0 %v234
      %v341 = vpop.f32.mrf.mxu0
      %v342 = vadd.f32 0.0, %v341
      %343 = vmatmul.f32.gmra.mxu0 %v235
      %v344 = vpop.f32.mrf.mxu0
      %v345 = vadd.f32 0.0, %v344
      %346 = vdwg.mxu0
      %v347 = vld [vmem:[%s2] sm:$0x1]
      %v348 = vld [vmem:[%s2 + $0x1] sm:$0x1]
      %v349 = vperm.slane %v347, 0
      %v350 = vmul.f32 %v270, %v349
      %v351 = vmul.f32 %v273, %v349
      %v352 = vmul.f32 %v276, %v349
      %v353 = vmul.f32 %v279, %v349
      %v354 = vmul.f32 %v282, %v349
      %v355 = vmul.f32 %v285, %v349
      %v356 = vmul.f32 %v288, %v349
      %v357 = vmul.f32 %v291, %v349
      %v358 = vmul.f32 %v294, %v349
      %v359 = vmul.f32 %v297, %v349
      %v360 = vmul.f32 %v300, %v349
      %v361 = vmul.f32 %v303, %v349
      %v362 = vmul.f32 %v306, %v349
      %v363 = vmul.f32 %v309, %v349
      %v364 = vmul.f32 %v312, %v349
      %v365 = vmul.f32 %v315, %v349
      %v366 = vmul.f32 %v318, %v349
      %v367 = vmul.f32 %v321, %v349
      %v368 = vmul.f32 %v324, %v349
      %v369 = vmul.f32 %v327, %v349
      %v370 = vmul.f32 %v330, %v349
      %v371 = vmul.f32 %v333, %v349
      %v372 = vmul.f32 %v336, %v349
      %v373 = vmul.f32 %v339, %v349
      %v374 = vmul.f32 %v342, %v349
      %v375 = vmul.f32 %v345, %v349
      %v376 = vperm.slane %v348, 0
      %v377 = vadd.f32 %v350, %v376
      %v378 = vadd.f32 %v351, %v376
      %v379 = vadd.f32 %v352, %v376
      %v380 = vadd.f32 %v353, %v376
      %v381 = vadd.f32 %v354, %v376
      %v382 = vadd.f32 %v355, %v376
      %v383 = vadd.f32 %v356, %v376
      %v384 = vadd.f32 %v357, %v376
      %v385 = vadd.f32 %v358, %v376
      %v386 = vadd.f32 %v359, %v376
      %v387 = vadd.f32 %v360, %v376
      %v388 = vadd.f32 %v361, %v376
      %v389 = vadd.f32 %v362, %v376
      %v390 = vadd.f32 %v363, %v376
      %v391 = vadd.f32 %v364, %v376
      %v392 = vadd.f32 %v365, %v376
      %v393 = vadd.f32 %v366, %v376
      %v394 = vadd.f32 %v367, %v376
      %v395 = vadd.f32 %v368, %v376
      %v396 = vadd.f32 %v369, %v376
      %v397 = vadd.f32 %v370, %v376
      %v398 = vadd.f32 %v371, %v376
      %v399 = vadd.f32 %v372, %v376
      %v400 = vadd.f32 %v373, %v376
      %v401 = vadd.f32 %v374, %v376
      %v402 = vadd.f32 %v375, %v376
      %v403 = vmax.f32 %v377, 0.0
      %v404 = vmax.f32 %v378, 0.0
      %v405 = vmax.f32 %v379, 0.0
      %v406 = vmax.f32 %v380, 0.0
      %v407 = vmax.f32 %v381, 0.0
      %v408 = vmax.f32 %v382, 0.0
      %v409 = vmax.f32 %v383, 0.0
      %v410 = vmax.f32 %v384, 0.0
      %v411 = vmax.f32 %v385, 0.0
      %v412 = vmax.f32 %v386, 0.0
      %v413 = vmax.f32 %v387, 0.0
      %v414 = vmax.f32 %v388, 0.0
      %v415 = vmax.f32 %v389, 0.0
      %v416 = vmax.f32 %v390, 0.0
      %v417 = vmax.f32 %v391, 0.0
      %v418 = vmax.f32 %v392, 0.0
      %v419 = vmax.f32 %v393, 0.0
      %v420 = vmax.f32 %v394, 0.0
      %v421 = vmax.f32 %v395, 0.0
      %v422 = vmax.f32 %v396, 0.0
      %v423 = vmax.f32 %v397, 0.0
      %v424 = vmax.f32 %v398, 0.0
      %v425 = vmax.f32 %v399, 0.0
      %v426 = vmax.f32 %v400, 0.0
      %v427 = vmax.f32 %v401, 0.0
      %v428 = vmax.f32 %v402, 0.0
      %vm429 = vcmask 64512
      %430 = vst.msk [vmem:[%s208] sm:$0xff] %vm429, %v403
      %431 = vst.msk [vmem:[%s208 + $0x8] sm:$0xff] %vm429, %v404
      %432 = vst.msk [vmem:[%s208 + $0x10] sm:$0xff] %vm429, %v405
      %433 = vst.msk [vmem:[%s208 + $0x18] sm:$0xff] %vm429, %v406
      %434 = vst.msk [vmem:[%s208 + $0x20] sm:$0xff] %vm429, %v407
      %435 = vst.msk [vmem:[%s208 + $0x28] sm:$0xff] %vm429, %v408
      %436 = vst.msk [vmem:[%s208 + $0x30] sm:$0xff] %vm429, %v409
      %437 = vst.msk [vmem:[%s208 + $0x38] sm:$0xff] %vm429, %v410
      %438 = vst.msk [vmem:[%s208 + $0x40] sm:$0xff] %vm429, %v411
      %439 = vst.msk [vmem:[%s208 + $0x48] sm:$0xff] %vm429, %v412
      %440 = vst.msk [vmem:[%s208 + $0x50] sm:$0xff] %vm429, %v413
      %441 = vst.msk [vmem:[%s208 + $0x58] sm:$0xff] %vm429, %v414
      %442 = vst.msk [vmem:[%s208 + $0x60] sm:$0xff] %vm429, %v415
      %443 = vst.msk [vmem:[%s208 + $0x68] sm:$0xff] %vm429, %v416
      %444 = vst.msk [vmem:[%s208 + $0x70] sm:$0xff] %vm429, %v417
      %445 = vst.msk [vmem:[%s208 + $0x78] sm:$0xff] %vm429, %v418
      %446 = vst.msk [vmem:[%s208 + $0x80] sm:$0xff] %vm429, %v419
      %447 = vst.msk [vmem:[%s208 + $0x88] sm:$0xff] %vm429, %v420
      %448 = vst.msk [vmem:[%s208 + $0x90] sm:$0xff] %vm429, %v421
      %449 = vst.msk [vmem:[%s208 + $0x98] sm:$0xff] %vm429, %v422
      %450 = vst.msk [vmem:[%s208 + $0xa0] sm:$0xff] %vm429, %v423
      %451 = vst.msk [vmem:[%s208 + $0xa8] sm:$0xff] %vm429, %v424
      %452 = vst.msk [vmem:[%s208 + $0xb0] sm:$0xff] %vm429, %v425
      %453 = vst.msk [vmem:[%s208 + $0xb8] sm:$0xff] %vm429, %v426
      %454 = vst.msk [vmem:[%s208 + $0xc0] sm:$0xff] %vm429, %v427
      %455 = vst.msk [vmem:[%s208 + $0xc8] sm:$0xff] %vm429, %v428
      %s456 = smul.u32 26, %s19
      %p457 = scmp.lt.s32.totalorder %s18, 1
      %s458 = scalar_select %p457, %s18, 1
      %p459 = scmp.lt.s32.totalorder %s456, 25
      %s460 = scalar_select %p459, %s456, 25
      %s461 = smul.addr %s458, 26
      %s462 = sadd.s32 %s460, %s461
      %s463 = smul.addr %s462, 8
      %s464 = scalar_lea.vmem %s3, %s463
      // Predicated region
      $region33: #{_conv_layer_forward_nhwc_impl.1} parent=31 // pred_check
        %p465 = pneg %p116
      $region34: #{_conv_layer_forward_nhwc_impl.1} parent=31 // pred_check_branch
        %467 = sbr.rel (%p465) target = $region36
      $region35: #{_conv_layer_forward_nhwc_impl.1} parent=31 // pred_region
        %s468 = smul.u32 26, %s19
      $region36: #{_conv_layer_forward_nhwc_impl.1} parent=31 // pred_fallthru
        _
    $region32: #{_conv_layer_forward_nhwc_impl.1} parent=5 // pred_fallthru
      _
    %p469 = scmp.le.s32.totalorder 2, %s9
    // Predicated region
    $region37: #{_conv_layer_forward_nhwc_impl.1} parent=5 // pred_check
      %p470 = pneg %p469
    $region38: #{_conv_layer_forward_nhwc_impl.1} parent=5 // pred_check_branch
      %472 = sbr.rel (%p470) target = $region40
    $region39: #{_conv_layer_forward_nhwc_impl.1} parent=5 // pred_region
      %s473 = ssub.s32 %s9, 2
      // Predicated region
      $region41: #{_conv_layer_forward_nhwc_impl.1} parent=39 // pred_check
        %p474 = pneg %p122
      $region42: #{_conv_layer_forward_nhwc_impl.1} parent=39 // pred_check_branch
        %476 = sbr.rel (%p474) target = $region44
      $region43: #{_conv_layer_forward_nhwc_impl.1} parent=39 // pred_region
        %s477 = smul.u32 26, %s21
        %p478 = scmp.lt.s32.totalorder %s20, 1
        %s479 = scalar_select %p478, %s20, 1
        %p480 = scmp.lt.s32.totalorder %s477, 25
        %s481 = scalar_select %p480, %s477, 25
        %s482 = smul.addr %s479, 26
        %s483 = sadd.s32 %s481, %s482
        %s484 = smul.addr %s483, 8
        %s485 = scalar_lea.vmem %s3, %s484
      $region44: #{_conv_layer_forward_nhwc_impl.1} parent=39 // pred_fallthru
        _
    $region40: #{_conv_layer_forward_nhwc_impl.1} parent=5 // pred_fallthru
      _
  $region6: #{_conv_layer_forward_nhwc_impl.1} parent=0 // loop_footer
    %s13 = sadd.s32 1, %s9
  $region7: #{_conv_layer_forward_nhwc_impl.1} parent=0 // loop_footer_branch
    %8 = sbr.rel target = $region3
  $region8: #{_conv_layer_forward_nhwc_impl.1} parent=0 // loop_exit
    _

</llo_original>
